<compile_context>
chip_gen: v6e
topology: v6e:2x2x1
jax: 0.10.0
libtpu: 0.0.40
codegen_flags: <defaults>
</compile_context>

<pallas_src>
import functools

import jax
import jax.numpy as jnp
from jax.experimental import pallas as pl
from jax.experimental.pallas import tpu as pltpu

D = 512          # embedding dim (hard-coded to 512 in the module)
LN_EPS = 1e-5    # nn.LayerNorm default eps
_T_CAP = 512     # cap on pos-embedding tile rows; grow the batch tile first


def _pos_ln_kernel(pos_ref, mem_ref, gamma_ref, beta_ref, out_ref):
    """Fused (pos_emb + mem) followed by LayerNorm over the last dim.

    pos_ref:   (Tt, D)      positional-embedding tile (shared across batch)
    mem_ref:   (Tb, Tt, D)  memory tile
    gamma_ref: (1, D)       LayerNorm weight
    beta_ref:  (1, D)       LayerNorm bias
    out_ref:   (Tb, Tt, D)
    """
    # Upcast once so LN statistics are always f32 (bf16-safe).
    x = mem_ref[...].astype(jnp.float32) + pos_ref[...].astype(jnp.float32)
    # Single-pass statistics: avoids materializing a second full-tile f32
    # temporary (`centered`) and a second reduce pass.
    mean = jnp.mean(x, axis=-1, keepdims=True)              # (Tb, Tt, 1)
    mean_sq = jnp.mean(x * x, axis=-1, keepdims=True)
    var = jnp.maximum(mean_sq - mean * mean, 0.0)
    inv = jax.lax.rsqrt(var + LN_EPS)
    gamma = gamma_ref[...].astype(jnp.float32)               # (1, D)
    beta = beta_ref[...].astype(jnp.float32)
    out_ref[...] = ((x - mean) * inv * gamma + beta).astype(out_ref.dtype)


def _vmem_limit_bytes():
    """Explicit scoped-VMEM limit: 3/4 of physical, capped at 96 MiB."""
    try:
        cap = int(pltpu.get_tpu_info().vmem_capacity_bytes)
    except Exception:
        cap = 64 * 1024 * 1024   # conservative fallback (v7x per-TC VMEM)
    return int(min(3 * cap // 4, 96 * 1024 * 1024))


def _choose_tiles(B, T, itemsize, vmem_limit):
    """Pick (tile_t, tile_b): cap tile_t (pos footprint), grow tile_b first.

    The mem/out block budget scales with the VMEM limit: ~4 MiB on v7x
    (48 MiB limit), ~8 MiB on v5e/v6e (96 MiB limit).
    """
    block_budget = min(8 * 1024 * 1024, max(2 * 1024 * 1024, vmem_limit // 12))
    sublane = {4: 8, 2: 16, 1: 32}.get(itemsize, 8)
    rows_budget = max(sublane, block_budget // (D * itemsize))
    t_limit = min(_T_CAP, rows_budget)
    if T <= t_limit:
        tile_t = T                      # full T axis -> no divisibility issue
    else:
        tile_t = max(sublane, (t_limit // sublane) * sublane)
    tile_b = max(1, min(B, rows_budget // tile_t))
    return tile_t, tile_b


@functools.partial(jax.jit, static_argnames=("tile_t", "tile_b"))
def learnable_positional_embedding(mem, pos_emb, gamma, beta, *,
                                   tile_t=None, tile_b=None):
    """mem: [B, T, D]; pos_emb: [T, D]; gamma/beta: [1, D] -> [B, T, D]."""
    B, T, d = mem.shape
    assert d == D and pos_emb.shape == (T, D)

    vmem_limit = _vmem_limit_bytes()
    if tile_t is None or tile_b is None:
        auto_t, auto_b = _choose_tiles(B, T, jnp.dtype(mem.dtype).itemsize,
                                       vmem_limit)
        tile_t = auto_t if tile_t is None else tile_t
        tile_b = auto_b if tile_b is None else tile_b

    t_tiles = pl.cdiv(T, tile_t)
    b_tiles = pl.cdiv(B, tile_b)

    if t_tiles > 1:
        # T tiled: batch innermost keeps the pos block resident (no re-DMA per
        # batch step); leading axis has >=2 iterations for megacore sharding.
        grid = (t_tiles, b_tiles)
        pos_map = lambda t, b: (t, 0)
        mem_map = lambda t, b: (b, t, 0)
        scalar_map = lambda t, b: (0, 0)
    else:
        # Single pos block: put batch first so v7x's two TensorCores both get
        # work when B_tiles >= 2 (pos residency is unaffected).
        grid = (b_tiles, t_tiles)
        pos_map = lambda b, t: (t, 0)
        mem_map = lambda b, t: (b, t, 0)
        scalar_map = lambda b, t: (0, 0)

    return pl.pallas_call(
        _pos_ln_kernel,
        out_shape=jax.ShapeDtypeStruct((B, T, D), mem.dtype),
        grid_spec=pltpu.PrefetchScalarGridSpec(
            num_scalar_prefetch=0,
            grid=grid,
            in_specs=[
                pl.BlockSpec((tile_t, D), pos_map),             # pos_emb
                pl.BlockSpec((tile_b, tile_t, D), mem_map),     # mem
                pl.BlockSpec((1, D), scalar_map),               # gamma
                pl.BlockSpec((1, D), scalar_map),               # beta
            ],
            out_specs=pl.BlockSpec((tile_b, tile_t, D), mem_map),
        ),
        compiler_params=pltpu.CompilerParams(
            dimension_semantics=("parallel", "parallel"),
            vmem_limit_bytes=vmem_limit),
    )(pos_emb, mem, gamma, beta)


def _reference(mem, pos_emb, gamma, beta):
    x = mem.astype(jnp.float32) + pos_emb.astype(jnp.float32)[None]
    mean = jnp.mean(x, axis=-1, keepdims=True)
    var = jnp.mean((x - mean) ** 2, axis=-1, keepdims=True)
    y = (x - mean) * jax.lax.rsqrt(var + LN_EPS) * gamma.astype(jnp.float32) \
        + beta.astype(jnp.float32)
    return y.astype(mem.dtype)


if __name__ == "__main__":
    key = jax.random.PRNGKey(0)
    k_emb, k_mem, k_mem2 = jax.random.split(key, 3)

    # ---- main test: batch=2, mem_length=16, f32 ----
    mem_length, batch = 16, 2
    emb_weight = jax.random.normal(k_emb, (mem_length, D), dtype=jnp.float32)
    gamma = jnp.ones((1, D), dtype=jnp.float32)    # nn.LayerNorm default init
    beta = jnp.zeros((1, D), dtype=jnp.float32)
    mem = jax.random.normal(k_mem, (batch, mem_length, D), dtype=jnp.float32)

    out = jax.block_until_ready(
        learnable_positional_embedding(mem, emb_weight, gamma, beta))
    ref = _reference(mem, emb_weight, gamma, beta)
    assert out.shape == (batch, mem_length, D)
    assert jnp.allclose(out, ref, atol=1e-4, rtol=1e-5)

    # ---- bf16 I/O test (stats stay f32 in-kernel) ----
    mem_bf = mem.astype(jnp.bfloat16)
    emb_bf = emb_weight.astype(jnp.bfloat16)
    out_bf = jax.block_until_ready(
        learnable_positional_embedding(mem_bf, emb_bf, gamma, beta))
    ref_bf = _reference(mem_bf, emb_bf, gamma, beta)
    assert jnp.allclose(out_bf.astype(jnp.float32), ref_bf.astype(jnp.float32),
                        atol=3e-2, rtol=3e-2)

    # ---- non-divisible-shape test with forced tiling (edge-block masking) ----
    T2, B2 = 24, 3
    emb2 = jax.random.normal(k_emb, (T2, D), dtype=jnp.float32)
    mem2 = jax.random.normal(k_mem2, (B2, T2, D), dtype=jnp.float32)
    out2 = jax.block_until_ready(
        learnable_positional_embedding(mem2, emb2, gamma, beta,
                                       tile_t=8, tile_b=2))
    ref2 = _reference(mem2, emb2, gamma, beta)
    assert jnp.allclose(out2, ref2, atol=1e-4, rtol=1e-5)

    print("KERNEL_OK")
</pallas_src>

<mosaic_0001>
module attributes {stable_mosaic.version = 11 : i64} {
  func.func @_pos_ln_kernel(%arg0: i32, %arg1: i32, %arg2: memref<16x512xf32, #tpu.memory_space<vmem>>, %arg3: memref<2x16x512xf32, #tpu.memory_space<vmem>>, %arg4: memref<1x512xf32, #tpu.memory_space<vmem>>, %arg5: memref<1x512xf32, #tpu.memory_space<vmem>>, %arg6: memref<2x16x512xf32, #tpu.memory_space<vmem>>) attributes {dimension_semantics = [#tpu.dimension_semantics<parallel>, #tpu.dimension_semantics<parallel>], iteration_bounds = array<i64: 1, 1>, scalar_prefetch = 0 : i64, scratch_operands = 0 : i64, tpu.core_type = #tpu.core_type<tc>, window_params = [{transform_indices = @transform_0, window_bounds = array<i64: 16, 512>}, {transform_indices = @transform_1, window_bounds = array<i64: 2, 16, 512>}, {pipeline_mode = #tpu.pipeline_mode<synchronous>, transform_indices = @transform_2, window_bounds = array<i64: 1, 512>}, {pipeline_mode = #tpu.pipeline_mode<synchronous>, transform_indices = @transform_3, window_bounds = array<i64: 1, 512>}, {transform_indices = @transform_4, window_bounds = array<i64: 2, 16, 512>}]} {
    %c0 = arith.constant 0 : index
    %c0_0 = arith.constant 0 : index
    %c0_1 = arith.constant 0 : index
    %0 = vector.load %arg3[%c0, %c0_0, %c0_1] : memref<2x16x512xf32, #tpu.memory_space<vmem>>, vector<2x16x512xf32>
    %c0_2 = arith.constant 0 : index
    %c0_3 = arith.constant 0 : index
    %1 = vector.load %arg2[%c0_2, %c0_3] : memref<16x512xf32, #tpu.memory_space<vmem>>, vector<16x512xf32>
    %2 = vector.shape_cast %1 : vector<16x512xf32> to vector<1x16x512xf32>
    %3 = vector.broadcast %2 : vector<1x16x512xf32> to vector<2x16x512xf32>
    %4 = arith.addf %0, %3 : vector<2x16x512xf32>
    %cst = arith.constant dense<0.000000e+00> : vector<2x16xf32>
    %5 = vector.multi_reduction <add>, %4, %cst [2] : vector<2x16x512xf32> to vector<2x16xf32>
    %6 = vector.shape_cast %5 : vector<2x16xf32> to vector<2x16x1xf32>
    %cst_4 = arith.constant 5.120000e+02 : f32
    %7 = vector.broadcast %cst_4 : f32 to vector<2x16x1xf32>
    %8 = arith.divf %6, %7 : vector<2x16x1xf32>
    %9 = arith.mulf %4, %4 : vector<2x16x512xf32>
    %cst_5 = arith.constant dense<0.000000e+00> : vector<2x16xf32>
    %10 = vector.multi_reduction <add>, %9, %cst_5 [2] : vector<2x16x512xf32> to vector<2x16xf32>
    %11 = vector.shape_cast %10 : vector<2x16xf32> to vector<2x16x1xf32>
    %cst_6 = arith.constant 5.120000e+02 : f32
    %12 = vector.broadcast %cst_6 : f32 to vector<2x16x1xf32>
    %13 = arith.divf %11, %12 : vector<2x16x1xf32>
    %14 = arith.mulf %8, %8 : vector<2x16x1xf32>
    %15 = arith.subf %13, %14 : vector<2x16x1xf32>
    %cst_7 = arith.constant 0.000000e+00 : f32
    %16 = vector.broadcast %cst_7 : f32 to vector<2x16x1xf32>
    %17 = arith.maximumf %15, %16 : vector<2x16x1xf32>
    %cst_8 = arith.constant 9.99999974E-6 : f32
    %18 = vector.broadcast %cst_8 : f32 to vector<2x16x1xf32>
    %19 = arith.addf %17, %18 : vector<2x16x1xf32>
    %20 = math.rsqrt %19 : vector<2x16x1xf32>
    %c0_9 = arith.constant 0 : index
    %c0_10 = arith.constant 0 : index
    %21 = vector.load %arg4[%c0_9, %c0_10] : memref<1x512xf32, #tpu.memory_space<vmem>>, vector<1x512xf32>
    %c0_11 = arith.constant 0 : index
    %c0_12 = arith.constant 0 : index
    %22 = vector.load %arg5[%c0_11, %c0_12] : memref<1x512xf32, #tpu.memory_space<vmem>>, vector<1x512xf32>
    %23 = vector.broadcast %8 : vector<2x16x1xf32> to vector<2x16x512xf32>
    %24 = arith.subf %4, %23 : vector<2x16x512xf32>
    %25 = vector.broadcast %20 : vector<2x16x1xf32> to vector<2x16x512xf32>
    %26 = arith.mulf %24, %25 : vector<2x16x512xf32>
    %27 = vector.shape_cast %21 : vector<1x512xf32> to vector<1x1x512xf32>
    %28 = vector.broadcast %27 : vector<1x1x512xf32> to vector<2x16x512xf32>
    %29 = arith.mulf %26, %28 : vector<2x16x512xf32>
    %30 = vector.shape_cast %22 : vector<1x512xf32> to vector<1x1x512xf32>
    %31 = vector.broadcast %30 : vector<1x1x512xf32> to vector<2x16x512xf32>
    %32 = arith.addf %29, %31 : vector<2x16x512xf32>
    %c0_13 = arith.constant 0 : index
    %c0_14 = arith.constant 0 : index
    %c0_15 = arith.constant 0 : index
    %33 = vector.load %arg6[%c0_13, %c0_14, %c0_15] : memref<2x16x512xf32, #tpu.memory_space<vmem>>, vector<2x16x512xf32>
    tpu.vector_store %arg6[%c0_13, %c0_14, %c0_15], %32 {strides = array<i32>} : memref<2x16x512xf32, #tpu.memory_space<vmem>>, vector<2x16x512xf32>,
    return
  }
  func.func @transform_0(%arg0: i32, %arg1: i32) -> (i32, i32) {
    %c0_i32 = arith.constant 0 : i32
    %c0_i32_0 = arith.constant 0 : i32
    return %arg1, %c0_i32 : i32, i32
  }
  func.func @transform_1(%arg0: i32, %arg1: i32) -> (i32, i32, i32) {
    %c0_i32 = arith.constant 0 : i32
    %c0_i32_0 = arith.constant 0 : i32
    return %arg0, %arg1, %c0_i32 : i32, i32, i32
  }
  func.func @transform_2(%arg0: i32, %arg1: i32) -> (i32, i32) {
    %c0_i32 = arith.constant 0 : i32
    %c0_i32_0 = arith.constant 0 : i32
    %c0_i32_1 = arith.constant 0 : i32
    return %c0_i32, %c0_i32_0 : i32, i32
  }
  func.func @transform_3(%arg0: i32, %arg1: i32) -> (i32, i32) {
    %c0_i32 = arith.constant 0 : i32
    %c0_i32_0 = arith.constant 0 : i32
    %c0_i32_1 = arith.constant 0 : i32
    return %c0_i32, %c0_i32_0 : i32, i32
  }
  func.func @transform_4(%arg0: i32, %arg1: i32) -> (i32, i32, i32) {
    %c0_i32 = arith.constant 0 : i32
    %c0_i32_0 = arith.constant 0 : i32
    return %arg0, %arg1, %c0_i32 : i32, i32, i32
  }
}

</mosaic_0001>

<llo_original>
// kernel: learnable_positional_embedding.1
$region0: #{learnable_positional_embedding.1}
  #allocation0 [shape = 'u32[]', space=smem, size = 0x4, offset = 0x4, fixed_abs, tag = 'smem constant byte address 0x4 - core index']
  #allocation1 [shape = 'u32[144,128]{1,0:T(1,128)}', space=vmem, size = 0x12000, scoped, tag = 'internal scratch']
  %s0 = inlined_call_operand.hbm [shape: f32[16,512], index: 0, kind: input, shape index: {}]
  %s1 = inlined_call_operand.hbm [shape: f32[2,16,512], index: 1, kind: input, shape index: {}]
  %s2 = inlined_call_operand.hbm [shape: f32[1,512], index: 2, kind: input, shape index: {}]
  %s3 = inlined_call_operand.vmem [shape: f32[1,512], index: 3, kind: input, shape index: {}]
  %s4 = inlined_call_operand.hbm [shape: f32[2,16,512], index: 4, kind: output, shape index: {}]
  %s5 = sld [smem:[#allocation0]]
  $region38: #{learnable_positional_embedding.1} parent=0
    _
  %s7 = ssub.s32 1, %s5
  %s8 = scalar_select 0, %s7, %s5
  $region1: #{learnable_positional_embedding.1} parent=0
    #allocation2 [shape = 'u8[32768]{0}', space=vmem, size = 0x8000, scoped, tag = 'input window, operand 0, single buffered']
    #allocation3 [shape = 's32[1]{0}', space=sflag, size = 0x4, scoped, tag = 'scoped memory for learnable_positional_embedding.1']
    #allocation4 [shape = 's32[1]{0}', space=sflag, size = 0x4, scoped, tag = 'scoped memory for learnable_positional_embedding.1']
    #allocation5 [shape = 'u8[65536]{0}', space=vmem, size = 0x10000, scoped, tag = 'input window, operand 1, single buffered']
    #allocation6 [shape = 's32[1]{0}', space=sflag, size = 0x4, scoped, tag = 'scoped memory for learnable_positional_embedding.1']
    #allocation7 [shape = 'u8[2048]{0}', space=vmem, size = 0x800, scoped, tag = 'input window, operand 2, single buffered']
    #allocation8 [shape = 'u8[65536]{0}', space=vmem, size = 0x10000, scoped, tag = 'output window, operand 0, single buffered']
    %9 = vsyncpa [#allocation3], 0
    %10 = vsyncpa [#allocation6], 0
    %11 = vsyncpa [#allocation4], 0
    // Predicated region
    $region2: #{learnable_positional_embedding.1} parent=1 // pred_check
      _
    $region3: #{learnable_positional_embedding.1} parent=1 // pred_check_branch
      %13 = sbr.rel (0) target = $region5
    $region4: #{learnable_positional_embedding.1} parent=1 // pred_region
      %s15 = ssub.s32 1024, 1024
      %16 = vsyncadd [#allocation3], %s15
      %s17 = sshll.u32 [#allocation2], 4
      %s18 = int_to_ptr.vmem [resolvable:$true] %s17
      %23 = dma.hbm_to_vmem [thread:$0]  %s0, 1024, %s18, [#allocation3], 512, 512, 32
    $region5: #{learnable_positional_embedding.1} parent=1 // pred_fallthru
      _
    // Predicated region
    $region6: #{learnable_positional_embedding.1} parent=1 // pred_check
      _
    $region7: #{learnable_positional_embedding.1} parent=1 // pred_check_branch
      %25 = sbr.rel (0) target = $region9
    $region8: #{learnable_positional_embedding.1} parent=1 // pred_region
      %s27 = ssub.s32 2048, 2048
      %28 = vsyncadd [#allocation6], %s27
      %s29 = sshll.u32 [#allocation5], 4
      %s30 = int_to_ptr.vmem [resolvable:$true] %s29
      %35 = dma.hbm_to_vmem [thread:$0]  %s1, 2048, %s30, [#allocation6], 512, 512, 32
    $region9: #{learnable_positional_embedding.1} parent=1 // pred_fallthru
      _
    // Predicated region
    $region10: #{learnable_positional_embedding.1} parent=1 // pred_check
      _
    $region11: #{learnable_positional_embedding.1} parent=1 // pred_check_branch
      %37 = sbr.rel (0) target = $region13
    $region12: #{learnable_positional_embedding.1} parent=1 // pred_region
      %s39 = ssub.s32 64, 64
      %40 = vsyncadd [#allocation6], %s39
      %s42 = sshll.u32 [#allocation7], 4
      %s43 = int_to_ptr.vmem [resolvable:$true] %s42
      %45 = dma.hbm_to_vmem [thread:$0]  %s2, 64, %s43, [#allocation6]
    $region13: #{learnable_positional_embedding.1} parent=1 // pred_fallthru
      _
    // Predicated region
    $region14: #{learnable_positional_embedding.1} parent=1 // pred_check
      _
    $region15: #{learnable_positional_embedding.1} parent=1 // pred_check_branch
      %47 = sbr.rel (0) target = $region17
    $region16: #{learnable_positional_embedding.1} parent=1 // pred_region
      _
    $region17: #{learnable_positional_embedding.1} parent=1 // pred_fallthru
      _
    // Predicated region
    $region18: #{learnable_positional_embedding.1} parent=1 // pred_check
      _
    $region19: #{learnable_positional_embedding.1} parent=1 // pred_check_branch
      %49 = sbr.rel (0) target = $region21
    $region20: #{learnable_positional_embedding.1} parent=1 // pred_region
      %50 = dma.done [#allocation3], 1024
    $region21: #{learnable_positional_embedding.1} parent=1 // pred_fallthru
      _
    // Predicated region
    $region22: #{learnable_positional_embedding.1} parent=1 // pred_check
      _
    $region23: #{learnable_positional_embedding.1} parent=1 // pred_check_branch
      %52 = sbr.rel (0) target = $region25
    $region24: #{learnable_positional_embedding.1} parent=1 // pred_region
      %53 = dma.done [#allocation6], 2048
    $region25: #{learnable_positional_embedding.1} parent=1 // pred_fallthru
      _
    // Predicated region
    $region26: #{learnable_positional_embedding.1} parent=1 // pred_check
      _
    $region27: #{learnable_positional_embedding.1} parent=1 // pred_check_branch
      %55 = sbr.rel (0) target = $region29
    $region28: #{learnable_positional_embedding.1} parent=1 // pred_region
      %56 = dma.done [#allocation6], 64
    $region29: #{learnable_positional_embedding.1} parent=1 // pred_fallthru
      _
    %v57 = vld [vmem:[#allocation5] sm:$0xff]
    %v58 = vld [vmem:[#allocation5 + $0x8] sm:$0xff]
    %v59 = vld [vmem:[#allocation5 + $0x10] sm:$0xff]
    %v60 = vld [vmem:[#allocation5 + $0x18] sm:$0xff]
    %v61 = vld [vmem:[#allocation5 + $0x20] sm:$0xff]
    %v62 = vld [vmem:[#allocation5 + $0x28] sm:$0xff]
    %v63 = vld [vmem:[#allocation5 + $0x30] sm:$0xff]
    %v64 = vld [vmem:[#allocation5 + $0x38] sm:$0xff]
    %v65 = vld [vmem:[#allocation5 + $0x40] sm:$0xff]
    %v66 = vld [vmem:[#allocation5 + $0x48] sm:$0xff]
    %v67 = vld [vmem:[#allocation5 + $0x50] sm:$0xff]
    %v68 = vld [vmem:[#allocation5 + $0x58] sm:$0xff]
    %v69 = vld [vmem:[#allocation5 + $0x60] sm:$0xff]
    %v70 = vld [vmem:[#allocation5 + $0x68] sm:$0xff]
    %v71 = vld [vmem:[#allocation5 + $0x70] sm:$0xff]
    %v72 = vld [vmem:[#allocation5 + $0x78] sm:$0xff]
    %v73 = vld [vmem:[#allocation2] sm:$0xff]
    %v74 = vld [vmem:[#allocation2 + $0x8] sm:$0xff]
    %v75 = vld [vmem:[#allocation2 + $0x10] sm:$0xff]
    %v76 = vld [vmem:[#allocation2 + $0x18] sm:$0xff]
    %v77 = vld [vmem:[#allocation2 + $0x20] sm:$0xff]
    %v78 = vld [vmem:[#allocation2 + $0x28] sm:$0xff]
    %v79 = vld [vmem:[#allocation2 + $0x30] sm:$0xff]
    %v80 = vld [vmem:[#allocation2 + $0x38] sm:$0xff]
    %v81 = vadd.f32 %v57, %v73
    %v82 = vadd.f32 %v58, %v74
    %v83 = vadd.f32 %v59, %v75
    %v84 = vadd.f32 %v60, %v76
    %v85 = vadd.f32 %v61, %v77
    %v86 = vadd.f32 %v62, %v78
    %v87 = vadd.f32 %v63, %v79
    %v88 = vadd.f32 %v64, %v80
    %v89 = vadd.f32 %v65, %v73
    %v90 = vadd.f32 %v66, %v74
    %v91 = vadd.f32 %v67, %v75
    %v92 = vadd.f32 %v68, %v76
    %v93 = vadd.f32 %v69, %v77
    %v94 = vadd.f32 %v70, %v78
    %v95 = vadd.f32 %v71, %v79
    %v96 = vadd.f32 %v72, %v80
    %v97 = vadd.f32 %v81, %v82
    %v98 = vadd.f32 %v97, %v83
    %v99 = vadd.f32 %v98, %v84
    %100 = vadd.xlane.f32.xlu0 %v99
    %v101 = vpop.xlane.xlu0 %100
    %v102 = vadd.f32 %v85, %v86
    %v103 = vadd.f32 %v102, %v87
    %v104 = vadd.f32 %v103, %v88
    %105 = vadd.xlane.f32.xlu0 %v104
    %v106 = vpop.xlane.xlu0 %105
    %v107 = vadd.f32 %v89, %v90
    %v108 = vadd.f32 %v107, %v91
    %v109 = vadd.f32 %v108, %v92
    %110 = vadd.xlane.f32.xlu0 %v109
    %v111 = vpop.xlane.xlu0 %110
    %v112 = vadd.f32 %v93, %v94
    %v113 = vadd.f32 %v112, %v95
    %v114 = vadd.f32 %v113, %v96
    %115 = vadd.xlane.f32.xlu0 %v114
    %v116 = vpop.xlane.xlu0 %115
    %v117 = vrcp.pop 512.0
    %v118 = vmul.f32 %v101, %v117
    %v119 = vmul.f32 %v106, %v117
    %v120 = vmul.f32 %v111, %v117
    %v121 = vmul.f32 %v116, %v117
    %v122 = vmul.f32 %v81, %v81
    %v123 = vmul.f32 %v82, %v82
    %v124 = vmul.f32 %v83, %v83
    %v125 = vmul.f32 %v84, %v84
    %v126 = vmul.f32 %v85, %v85
    %v127 = vmul.f32 %v86, %v86
    %v128 = vmul.f32 %v87, %v87
    %v129 = vmul.f32 %v88, %v88
    %v130 = vmul.f32 %v89, %v89
    %v131 = vmul.f32 %v90, %v90
    %v132 = vmul.f32 %v91, %v91
    %v133 = vmul.f32 %v92, %v92
    %v134 = vmul.f32 %v93, %v93
    %v135 = vmul.f32 %v94, %v94
    %v136 = vmul.f32 %v95, %v95
    %v137 = vmul.f32 %v96, %v96
    %v138 = vadd.f32 %v122, %v123
    %v139 = vadd.f32 %v138, %v124
    %v140 = vadd.f32 %v139, %v125
    %141 = vadd.xlane.f32.xlu0 %v140
    %v142 = vpop.xlane.xlu0 %141
    %v143 = vadd.f32 %v126, %v127
    %v144 = vadd.f32 %v143, %v128
    %v145 = vadd.f32 %v144, %v129
    %146 = vadd.xlane.f32.xlu0 %v145
    %v147 = vpop.xlane.xlu0 %146
    %v148 = vadd.f32 %v130, %v131
    %v149 = vadd.f32 %v148, %v132
    %v150 = vadd.f32 %v149, %v133
    %151 = vadd.xlane.f32.xlu0 %v150
    %v152 = vpop.xlane.xlu0 %151
    %v153 = vadd.f32 %v134, %v135
    %v154 = vadd.f32 %v153, %v136
    %v155 = vadd.f32 %v154, %v137
    %156 = vadd.xlane.f32.xlu0 %v155
    %v157 = vpop.xlane.xlu0 %156
    %v158 = vmul.f32 %v142, %v117
    %v159 = vmul.f32 %v147, %v117
    %v160 = vmul.f32 %v152, %v117
    %v161 = vmul.f32 %v157, %v117
    %v162 = vmul.f32 %v118, %v118
    %v163 = vmul.f32 %v119, %v119
    %v164 = vmul.f32 %v120, %v120
    %v165 = vmul.f32 %v121, %v121
    %v166 = vsub.f32 %v158, %v162
    %v167 = vsub.f32 %v159, %v163
    %v168 = vsub.f32 %v160, %v164
    %v169 = vsub.f32 %v161, %v165
    %v170 = vmax.f32 %v166, 0.0
    %v171 = vmax.f32 %v167, 0.0
    %v172 = vmax.f32 %v168, 0.0
    %v173 = vmax.f32 %v169, 0.0
    %v174 = vadd.f32 %v170, 1e-05
    %v175 = vadd.f32 %v171, 1e-05
    %v176 = vadd.f32 %v172, 1e-05
    %v177 = vadd.f32 %v173, 1e-05
    %v178 = vrsqrt.pop %v174
    %v179 = vrsqrt.pop %v175
    %v180 = vrsqrt.pop %v176
    %v181 = vrsqrt.pop %v177
    %v182 = vld [vmem:[#allocation7] sm:$0xf]
    %v183 = vld [vmem:[%s3] sm:$0xf]
    %v184 = vsub.f32 %v81, %v118
    %v185 = vsub.f32 %v82, %v118
    %v186 = vsub.f32 %v83, %v118
    %v187 = vsub.f32 %v84, %v118
    %v188 = vsub.f32 %v85, %v119
    %v189 = vsub.f32 %v86, %v119
    %v190 = vsub.f32 %v87, %v119
    %v191 = vsub.f32 %v88, %v119
    %v192 = vsub.f32 %v89, %v120
    %v193 = vsub.f32 %v90, %v120
    %v194 = vsub.f32 %v91, %v120
    %v195 = vsub.f32 %v92, %v120
    %v196 = vsub.f32 %v93, %v121
    %v197 = vsub.f32 %v94, %v121
    %v198 = vsub.f32 %v95, %v121
    %v199 = vsub.f32 %v96, %v121
    %v200 = vmul.f32 %v184, %v178
    %v201 = vmul.f32 %v185, %v178
    %v202 = vmul.f32 %v186, %v178
    %v203 = vmul.f32 %v187, %v178
    %v204 = vmul.f32 %v188, %v179
    %v205 = vmul.f32 %v189, %v179
    %v206 = vmul.f32 %v190, %v179
    %v207 = vmul.f32 %v191, %v179
    %v208 = vmul.f32 %v192, %v180
    %v209 = vmul.f32 %v193, %v180
    %v210 = vmul.f32 %v194, %v180
    %v211 = vmul.f32 %v195, %v180
    %v212 = vmul.f32 %v196, %v181
    %v213 = vmul.f32 %v197, %v181
    %v214 = vmul.f32 %v198, %v181
    %v215 = vmul.f32 %v199, %v181
    %v217 = vlaneseq
    %v218 = vshrl.u32 %v217, 7
    %v219 = vsub.s32 0, %v218
    %v220 = vrot.slane %v182, %v219
    %v221 = vlaneseq
    %v222 = vshrl.u32 %v221, 7
    %v223 = vsub.s32 1, %v222
    %v224 = vrot.slane %v182, %v223
    %v225 = vlaneseq
    %v226 = vshrl.u32 %v225, 7
    %v227 = vsub.s32 2, %v226
    %v228 = vrot.slane %v182, %v227
    %v229 = vlaneseq
    %v230 = vshrl.u32 %v229, 7
    %v231 = vsub.s32 3, %v230
    %v232 = vrot.slane %v182, %v231
    %v237 = vmul.f32 %v200, %v220
    %v238 = vmul.f32 %v201, %v224
    %v239 = vmul.f32 %v202, %v228
    %v240 = vmul.f32 %v203, %v232
    %v241 = vmul.f32 %v204, %v220
    %v242 = vmul.f32 %v205, %v224
    %v243 = vmul.f32 %v206, %v228
    %v244 = vmul.f32 %v207, %v232
    %v245 = vmul.f32 %v208, %v220
    %v246 = vmul.f32 %v209, %v224
    %v247 = vmul.f32 %v210, %v228
    %v248 = vmul.f32 %v211, %v232
    %v249 = vmul.f32 %v212, %v220
    %v250 = vmul.f32 %v213, %v224
    %v251 = vmul.f32 %v214, %v228
    %v252 = vmul.f32 %v215, %v232
    %v254 = vlaneseq
    %v255 = vshrl.u32 %v254, 7
    %v256 = vsub.s32 0, %v255
    %v257 = vrot.slane %v183, %v256
    %v258 = vlaneseq
    %v259 = vshrl.u32 %v258, 7
    %v260 = vsub.s32 1, %v259
    %v261 = vrot.slane %v183, %v260
    %v262 = vlaneseq
    %v263 = vshrl.u32 %v262, 7
    %v264 = vsub.s32 2, %v263
    %v265 = vrot.slane %v183, %v264
    %v266 = vlaneseq
    %v267 = vshrl.u32 %v266, 7
    %v268 = vsub.s32 3, %v267
    %v269 = vrot.slane %v183, %v268
    %v274 = vadd.f32 %v237, %v257
    %v275 = vadd.f32 %v238, %v261
    %v276 = vadd.f32 %v239, %v265
    %v277 = vadd.f32 %v240, %v269
    %v278 = vadd.f32 %v241, %v257
    %v279 = vadd.f32 %v242, %v261
    %v280 = vadd.f32 %v243, %v265
    %v281 = vadd.f32 %v244, %v269
    %v282 = vadd.f32 %v245, %v257
    %v283 = vadd.f32 %v246, %v261
    %v284 = vadd.f32 %v247, %v265
    %v285 = vadd.f32 %v248, %v269
    %v286 = vadd.f32 %v249, %v257
    %v287 = vadd.f32 %v250, %v261
    %v288 = vadd.f32 %v251, %v265
    %v289 = vadd.f32 %v252, %v269
    %290 = vst [vmem:[#allocation8] sm:$0xff] %v274
    %291 = vst [vmem:[#allocation8 + $0x8] sm:$0xff] %v275
    %292 = vst [vmem:[#allocation8 + $0x10] sm:$0xff] %v276
    %293 = vst [vmem:[#allocation8 + $0x18] sm:$0xff] %v277
    %294 = vst [vmem:[#allocation8 + $0x20] sm:$0xff] %v278
    %295 = vst [vmem:[#allocation8 + $0x28] sm:$0xff] %v279
    %296 = vst [vmem:[#allocation8 + $0x30] sm:$0xff] %v280
    %297 = vst [vmem:[#allocation8 + $0x38] sm:$0xff] %v281
    %298 = vst [vmem:[#allocation8 + $0x40] sm:$0xff] %v282
    %299 = vst [vmem:[#allocation8 + $0x48] sm:$0xff] %v283
    %300 = vst [vmem:[#allocation8 + $0x50] sm:$0xff] %v284
    %301 = vst [vmem:[#allocation8 + $0x58] sm:$0xff] %v285
    %302 = vst [vmem:[#allocation8 + $0x60] sm:$0xff] %v286
    %303 = vst [vmem:[#allocation8 + $0x68] sm:$0xff] %v287
    %304 = vst [vmem:[#allocation8 + $0x70] sm:$0xff] %v288
    %305 = vst [vmem:[#allocation8 + $0x78] sm:$0xff] %v289
    // Predicated region
    $region30: #{learnable_positional_embedding.1} parent=1 // pred_check
      _
    $region31: #{learnable_positional_embedding.1} parent=1 // pred_check_branch
      %307 = sbr.rel (0) target = $region33
    $region32: #{learnable_positional_embedding.1} parent=1 // pred_region
      %s309 = ssub.s32 2048, 2048
      %310 = vsyncadd [#allocation4], %s309
      %s311 = sshll.u32 [#allocation8], 4
      %s312 = int_to_ptr.vmem [resolvable:$true] %s311
      %317 = dma.vmem_to_hbm [thread:$0]  %s312, 2048, %s4, [#allocation4], 512, 512, 32
    $region33: #{learnable_positional_embedding.1} parent=1 // pred_fallthru
      _
    // Predicated region
    $region34: #{learnable_positional_embedding.1} parent=1 // pred_check
      _
    $region35: #{learnable_positional_embedding.1} parent=1 // pred_check_branch
      %319 = sbr.rel (0) target = $region37
    $region36: #{learnable_positional_embedding.1} parent=1 // pred_region
      %320 = dma.done [#allocation4], 2048
    $region37: #{learnable_positional_embedding.1} parent=1 // pred_fallthru
      _
    %321 = vsyncpa [#allocation3], 1
    %322 = vsyncpa [#allocation6], 1
    %323 = vsyncpa [#allocation4], 1

</llo_original>
